<compile_context>
chip_gen: v7x
topology: tpu7x:2x2x1
jax: 0.10.0
libtpu: 0.0.40
codegen_flags: <defaults>
</compile_context>

<pallas_src>
import functools
import math

import jax
import jax.numpy as jnp
from jax import lax
from jax.experimental import pallas as pl
from jax.experimental.pallas import tpu as pltpu

# Module hyper-params (from the PyTorch source)
D_MODEL = 4
HEADS = 2
D_K = D_MODEL // HEADS

# Example sizes
BATCH = 2
SEQ = 8

NEG_INF = -1e9


def _mha_kernel(x_ref, mask_ref, w_ref, bqkv_ref, bo_ref, o_ref, *, heads):
    """One grid step == one batch element.

    x_ref:    [3, S, D]    packed q/k/v rows for this batch element
    mask_ref: [1, 2, S, S] plane 0 = keep * 1/sqrt(d_k), plane 1 = additive -1e9 bias
    w_ref:    [4H, D, d_k] head-split weights: wq_h.. | wk_h.. | wv_h.. | wo_h^T..
    bqkv_ref: [3H, 1, d_k] head-split projection biases (same ordering as w_ref[:3H])
    bo_ref:   [1, D]       output-projection bias
    o_ref:    [S, D]       output block
    """
    h3 = 3 * heads

    x = x_ref[...]                                     # [3, S, D]
    _, seq, d_model = x.shape
    w = w_ref[...]                                     # [4H, D, d_k]
    b_qkv = bqkv_ref[...]                              # [3H, 1, d_k]
    m = mask_ref[...]                                  # [1, 2, S, S]

    # --- q/k/v projections for every head in ONE batched MXU contraction. ---
    # Broadcast the 3 inputs over heads along a leading (untiled) dim; the per-head
    # weight split was done wrapper-side, so there are no lane-offset slices here.
    x6 = jnp.broadcast_to(x[:, None, :, :], (3, heads, seq, d_model))
    x6 = x6.reshape(h3, seq, d_model)                  # [3H, S, D]
    proj = lax.dot_general(
        x6, w[:h3],
        dimension_numbers=(((2,), (1,)), ((0,), (0,))),
        preferred_element_type=jnp.float32) + b_qkv    # [3H, S, d_k]

    qh = proj[:heads]                                  # [H, S, d_k]
    kh = proj[heads:2 * heads]                         # [H, S, d_k]
    vh = proj[2 * heads:]                              # [H, S, d_k]

    # --- scores = (q @ k^T) / sqrt(d_k), then masked_fill(mask==0, -1e9). ---
    # Contract the d_k axes directly (no explicit transpose). Scaling and masking are
    # fused into one multiply-add using the wrapper-precomputed planes; masked
    # positions become exactly -1e9 (true masked_fill semantics).
    scores = lax.dot_general(
        qh, kh, (((2,), (2,)), ((0,), (0,))),
        preferred_element_type=jnp.float32)            # [H, S, S]
    keep_scaled = m[0, 0]                              # [S, S]
    add_bias = m[0, 1]                                 # [S, S]
    scores = scores * keep_scaled[None, :, :] + add_bias[None, :, :]

    # --- numerically stable softmax, f32, exact divide. ---
    scores = scores - jnp.max(scores, axis=-1, keepdims=True)
    e = jnp.exp(scores)
    p = e / jnp.sum(e, axis=-1, keepdims=True)         # [H, S, S]

    # --- attention output per head, batched over heads. ---
    head_out = lax.dot_general(
        p, vh, (((2,), (1,)), ((0,), (0,))),
        preferred_element_type=jnp.float32)            # [H, S, d_k]

    # --- output projection with the head-concat folded into the matmul. ---
    # w[3H:] holds wo_h^T ([H, D, d_k]); contract d_k batched over heads, then reduce
    # over heads (H=2 -> a single VPU add) and add the output bias once.
    out_h = lax.dot_general(
        head_out, w[h3:], (((2,), (2,)), ((0,), (0,))),
        preferred_element_type=jnp.float32)            # [H, S, D]
    out = jnp.sum(out_h, axis=0) + bo_ref[...]         # [S, D]

    # Single full-block store per grid step.
    o_ref[...] = out.astype(o_ref.dtype)


def multi_head_attention(q, k, v, mask, params):
    """q, k, v: [B, S, D] float32; mask: [B, S, S] float32 (0/1 keep mask).
    params: wq/wk/wv/wo as [D, D] in [in, out] layout, bq/bk/bv/bo as [1, D]."""
    B, S, D = q.shape
    H, dk = HEADS, D_K

    # ---------- wrapper-side packing (fuses into XLA, off the kernel path) ----------
    # 1 descriptor: packed q/k/v rows.
    x_qkv = jnp.stack(
        [q.reshape(B * S, D), k.reshape(B * S, D), v.reshape(B * S, D)], axis=0)

    # 1 descriptor: mask planes. Plane 0 carries the 1/sqrt(d_k) scale on kept
    # positions, plane 1 the -1e9 fill for masked positions.
    inv_sqrt_dk = jnp.float32(1.0 / math.sqrt(dk))
    keep_scaled = jnp.where(mask == 0, jnp.float32(0.0), inv_sqrt_dk)
    add_bias = jnp.where(mask == 0, jnp.float32(NEG_INF), jnp.float32(0.0))
    mask_pack = jnp.stack([keep_scaled, add_bias], axis=1)           # [B, 2, S, S]

    # 1 descriptor: all weights, head-split wrapper-side so the kernel never slices
    # activations at lane offsets < 128.
    def w_heads(w):                       # [D, D] ([in, out]) -> [H, D, dk]
        return w.reshape(D, H, dk).transpose(1, 0, 2)

    woT_heads = params["wo"].reshape(H, dk, D).transpose(0, 2, 1)    # [H, D, dk]
    w_all = jnp.concatenate(
        [w_heads(params["wq"]), w_heads(params["wk"]), w_heads(params["wv"]), woT_heads],
        axis=0)                                                      # [4H, D, dk]

    # 1 descriptor: head-split q/k/v biases; 1 descriptor: output bias.
    def b_heads(b):                       # [1, D] -> [H, 1, dk]
        return b.reshape(H, 1, dk)

    b_qkv = jnp.concatenate(
        [b_heads(params["bq"]), b_heads(params["bk"]), b_heads(params["bv"])], axis=0)
    bo = params["bo"].reshape(1, D)

    kernel = functools.partial(_mha_kernel, heads=H)

    out2 = pl.pallas_call(
        kernel,
        out_shape=jax.ShapeDtypeStruct((B * S, D), q.dtype),
        grid_spec=pltpu.PrefetchScalarGridSpec(
            num_scalar_prefetch=0,
            grid=(B,),                                   # parallel over batch (v7x: 2 TCs)
            in_specs=[
                pl.BlockSpec((3, S, D), lambda b: (0, b, 0)),
                pl.BlockSpec((1, 2, S, S), lambda b: (b, 0, 0, 0)),
                pl.BlockSpec((4 * H, D, dk), lambda b: (0, 0, 0)),
                pl.BlockSpec((3 * H, 1, dk), lambda b: (0, 0, 0)),
                pl.BlockSpec((1, D), lambda b: (0, 0)),
            ],
            out_specs=pl.BlockSpec((S, D), lambda b: (b, 0)),
        ),
        compiler_params=pltpu.CompilerParams(
            dimension_semantics=("parallel",)),
    )(x_qkv, mask_pack, w_all, b_qkv, bo)

    return out2.reshape(B, S, D)


def _reference_mha(q, k, v, mask, params):
    """Pure-JAX reference mirroring the PyTorch forward exactly."""
    B, S, D = q.shape

    def linear(x, w, b):
        return x @ w + b  # w is already [in, out]

    qp = linear(q, params["wq"], params["bq"]).reshape(B, S, HEADS, D_K).transpose(0, 2, 1, 3)
    kp = linear(k, params["wk"], params["bk"]).reshape(B, S, HEADS, D_K).transpose(0, 2, 1, 3)
    vp = linear(v, params["wv"], params["bv"]).reshape(B, S, HEADS, D_K).transpose(0, 2, 1, 3)

    scores = jnp.einsum("bhqd,bhkd->bhqk", qp, kp) / math.sqrt(D_K)
    m = mask[:, None, :, :]  # mask.unsqueeze(1)
    scores = jnp.where(m == 0, NEG_INF, scores)
    scores = jax.nn.softmax(scores, axis=-1)
    out = jnp.einsum("bhqk,bhkd->bhqd", scores, vp)
    concat = out.transpose(0, 2, 1, 3).reshape(B, S, D)
    return linear(concat, params["wo"], params["bo"])


def _init_params(key):
    """Deterministic parameter init, PyTorch-Linear-like uniform(-1/sqrt(in), 1/sqrt(in))."""
    bound = 1.0 / math.sqrt(D_MODEL)
    keys = jax.random.split(key, 8)
    params = {}
    for i, name in enumerate(["q", "k", "v", "o"]):
        w = jax.random.uniform(keys[2 * i], (D_MODEL, D_MODEL), jnp.float32, -bound, bound)
        b = jax.random.uniform(keys[2 * i + 1], (D_MODEL,), jnp.float32, -bound, bound)
        params[f"w{name}"] = w.T               # [in, out]
        params[f"b{name}"] = b.reshape(1, D_MODEL)
    return params


if __name__ == "__main__":
    key = jax.random.PRNGKey(0)
    kq, kk, kv, kp = jax.random.split(key, 4)

    q = jax.random.normal(kq, (BATCH, SEQ, D_MODEL), jnp.float32)
    k = jax.random.normal(kk, (BATCH, SEQ, D_MODEL), jnp.float32)
    v = jax.random.normal(kv, (BATCH, SEQ, D_MODEL), jnp.float32)

    # Causal mask [B, S, S] of 0/1 (broadcast over heads).
    mask = jnp.tril(jnp.ones((SEQ, SEQ), jnp.float32))[None].repeat(BATCH, axis=0)

    params = _init_params(kp)

    out = multi_head_attention(q, k, v, mask, params)
    out = jax.block_until_ready(out)

    ref = _reference_mha(q, k, v, mask, params)
    assert out.shape == (BATCH, SEQ, D_MODEL)
    # Exact-softmax f32 path: tight tolerance.
    assert jnp.allclose(out, ref, atol=1e-4, rtol=1e-4), "Pallas output mismatch vs JAX reference"

    print("KERNEL_OK")
</pallas_src>

<mosaic_0001>
module attributes {stable_mosaic.version = 11 : i64} {
  func.func @_mha_kernel(%arg0: i32, %arg1: memref<3x8x4xf32, #tpu.memory_space<vmem>>, %arg2: memref<1x2x8x8xf32, #tpu.memory_space<vmem>>, %arg3: memref<8x4x2xf32, #tpu.memory_space<vmem>>, %arg4: memref<6x1x2xf32, #tpu.memory_space<vmem>>, %arg5: memref<1x4xf32, #tpu.memory_space<vmem>>, %arg6: memref<8x4xf32, #tpu.memory_space<vmem>>) attributes {dimension_semantics = [#tpu.dimension_semantics<parallel>], iteration_bounds = array<i64: 2>, scalar_prefetch = 0 : i64, scratch_operands = 0 : i64, tpu.core_type = #tpu.core_type<tc>, window_params = [{transform_indices = @transform_0, window_bounds = array<i64: 3, 8, 4>}, {transform_indices = @transform_1, window_bounds = array<i64: 1, 2, 8, 8>}, {pipeline_mode = #tpu.pipeline_mode<synchronous>, transform_indices = @transform_2, window_bounds = array<i64: 8, 4, 2>}, {pipeline_mode = #tpu.pipeline_mode<synchronous>, transform_indices = @transform_3, window_bounds = array<i64: 6, 1, 2>}, {pipeline_mode = #tpu.pipeline_mode<synchronous>, transform_indices = @transform_4, window_bounds = array<i64: 1, 4>}, {transform_indices = @transform_5, window_bounds = array<i64: 8, 4>}]} {
    %c0 = arith.constant 0 : index
    %c0_0 = arith.constant 0 : index
    %c0_1 = arith.constant 0 : index
    %0 = vector.load %arg1[%c0, %c0_0, %c0_1] : memref<3x8x4xf32, #tpu.memory_space<vmem>>, vector<3x8x4xf32>
    %c0_2 = arith.constant 0 : index
    %c0_3 = arith.constant 0 : index
    %c0_4 = arith.constant 0 : index
    %1 = vector.load %arg3[%c0_2, %c0_3, %c0_4] : memref<8x4x2xf32, #tpu.memory_space<vmem>>, vector<8x4x2xf32>
    %c0_5 = arith.constant 0 : index
    %c0_6 = arith.constant 0 : index
    %c0_7 = arith.constant 0 : index
    %2 = vector.load %arg4[%c0_5, %c0_6, %c0_7] : memref<6x1x2xf32, #tpu.memory_space<vmem>>, vector<6x1x2xf32>
    %c0_8 = arith.constant 0 : index
    %c0_9 = arith.constant 0 : index
    %c0_10 = arith.constant 0 : index
    %c0_11 = arith.constant 0 : index
    %3 = vector.load %arg2[%c0_8, %c0_9, %c0_10, %c0_11] : memref<1x2x8x8xf32, #tpu.memory_space<vmem>>, vector<1x2x8x8xf32>
    %4 = vector.shape_cast %0 : vector<3x8x4xf32> to vector<3x1x8x4xf32>
    %5 = vector.shape_cast %4 : vector<3x1x8x4xf32> to vector<3x1x8x4xf32>
    %6 = vector.broadcast %5 : vector<3x1x8x4xf32> to vector<3x2x8x4xf32>
    %7 = vector.shape_cast %6 : vector<3x2x8x4xf32> to vector<6x8x4xf32>
    %8 = vector.extract_strided_slice %1 {offsets = [0, 0, 0], sizes = [6, 4, 2], strides = [1, 1, 1]} : vector<8x4x2xf32> to vector<6x4x2xf32>
    %cst = arith.constant dense<0.000000e+00> : vector<6x8x2xf32>
    %9 = tpu.matmul %7, %8, %cst {dimension_numbers = #tpu.dot_dimension_numbers<[2], [1], [1], [2], [0, 0, 0, 1, 1, 2], [0], [0]>} : vector<6x8x4xf32>, vector<6x4x2xf32>, vector<6x8x2xf32> -> vector<6x8x2xf32>
    %10 = vector.broadcast %2 : vector<6x1x2xf32> to vector<6x8x2xf32>
    %11 = arith.addf %9, %10 : vector<6x8x2xf32>
    %12 = vector.extract_strided_slice %11 {offsets = [0, 0, 0], sizes = [2, 8, 2], strides = [1, 1, 1]} : vector<6x8x2xf32> to vector<2x8x2xf32>
    %13 = vector.extract_strided_slice %11 {offsets = [2, 0, 0], sizes = [2, 8, 2], strides = [1, 1, 1]} : vector<6x8x2xf32> to vector<2x8x2xf32>
    %14 = vector.extract_strided_slice %11 {offsets = [4, 0, 0], sizes = [2, 8, 2], strides = [1, 1, 1]} : vector<6x8x2xf32> to vector<2x8x2xf32>
    %cst_12 = arith.constant dense<0.000000e+00> : vector<2x8x8xf32>
    %15 = tpu.matmul %12, %13, %cst_12 {dimension_numbers = #tpu.dot_dimension_numbers<[2], [2], [1], [1], [0, 0, 0, 1, 1, 1], [0], [0]>} : vector<2x8x2xf32>, vector<2x8x2xf32>, vector<2x8x8xf32> -> vector<2x8x8xf32>
    %16 = vector.extract_strided_slice %3 {offsets = [0, 0, 0, 0], sizes = [1, 1, 8, 8], strides = [1, 1, 1, 1]} : vector<1x2x8x8xf32> to vector<1x1x8x8xf32>
    %17 = vector.shape_cast %16 : vector<1x1x8x8xf32> to vector<8x8xf32>
    %18 = vector.extract_strided_slice %3 {offsets = [0, 1, 0, 0], sizes = [1, 1, 8, 8], strides = [1, 1, 1, 1]} : vector<1x2x8x8xf32> to vector<1x1x8x8xf32>
    %19 = vector.shape_cast %18 : vector<1x1x8x8xf32> to vector<8x8xf32>
    %20 = vector.shape_cast %17 : vector<8x8xf32> to vector<1x8x8xf32>
    %21 = vector.broadcast %20 : vector<1x8x8xf32> to vector<2x8x8xf32>
    %22 = arith.mulf %15, %21 : vector<2x8x8xf32>
    %23 = vector.shape_cast %19 : vector<8x8xf32> to vector<1x8x8xf32>
    %24 = vector.broadcast %23 : vector<1x8x8xf32> to vector<2x8x8xf32>
    %25 = arith.addf %22, %24 : vector<2x8x8xf32>
    %cst_13 = arith.constant dense<0xFF800000> : vector<2x8xf32>
    %26 = vector.multi_reduction <maximumf>, %25, %cst_13 [2] : vector<2x8x8xf32> to vector<2x8xf32>
    %27 = vector.shape_cast %26 : vector<2x8xf32> to vector<2x8x1xf32>
    %28 = vector.broadcast %27 : vector<2x8x1xf32> to vector<2x8x8xf32>
    %29 = arith.subf %25, %28 : vector<2x8x8xf32>
    %30 = math.exp %29 : vector<2x8x8xf32>
    %cst_14 = arith.constant dense<0.000000e+00> : vector<2x8xf32>
    %31 = vector.multi_reduction <add>, %30, %cst_14 [2] : vector<2x8x8xf32> to vector<2x8xf32>
    %32 = vector.shape_cast %31 : vector<2x8xf32> to vector<2x8x1xf32>
    %33 = vector.broadcast %32 : vector<2x8x1xf32> to vector<2x8x8xf32>
    %34 = arith.divf %30, %33 : vector<2x8x8xf32>
    %cst_15 = arith.constant dense<0.000000e+00> : vector<2x8x2xf32>
    %35 = tpu.matmul %34, %14, %cst_15 {dimension_numbers = #tpu.dot_dimension_numbers<[2], [1], [1], [2], [0, 0, 0, 1, 1, 2], [0], [0]>} : vector<2x8x8xf32>, vector<2x8x2xf32>, vector<2x8x2xf32> -> vector<2x8x2xf32>
    %36 = vector.extract_strided_slice %1 {offsets = [6, 0, 0], sizes = [2, 4, 2], strides = [1, 1, 1]} : vector<8x4x2xf32> to vector<2x4x2xf32>
    %cst_16 = arith.constant dense<0.000000e+00> : vector<2x8x4xf32>
    %37 = tpu.matmul %35, %36, %cst_16 {dimension_numbers = #tpu.dot_dimension_numbers<[2], [2], [1], [1], [0, 0, 0, 1, 1, 1], [0], [0]>} : vector<2x8x2xf32>, vector<2x4x2xf32>, vector<2x8x4xf32> -> vector<2x8x4xf32>
    %cst_17 = arith.constant dense<0.000000e+00> : vector<8x4xf32>
    %38 = vector.multi_reduction <add>, %37, %cst_17 [0] : vector<2x8x4xf32> to vector<8x4xf32>
    %c0_18 = arith.constant 0 : index
    %c0_19 = arith.constant 0 : index
    %39 = vector.load %arg5[%c0_18, %c0_19] : memref<1x4xf32, #tpu.memory_space<vmem>>, vector<1x4xf32>
    %40 = vector.broadcast %39 : vector<1x4xf32> to vector<8x4xf32>
    %41 = arith.addf %38, %40 : vector<8x4xf32>
    %c0_20 = arith.constant 0 : index
    %c0_21 = arith.constant 0 : index
    %42 = vector.load %arg6[%c0_20, %c0_21] : memref<8x4xf32, #tpu.memory_space<vmem>>, vector<8x4xf32>
    tpu.vector_store %arg6[%c0_20, %c0_21], %41 {strides = array<i32>} : memref<8x4xf32, #tpu.memory_space<vmem>>, vector<8x4xf32>,
    return
  }
  func.func @transform_0(%arg0: i32) -> (i32, i32, i32) {
    %c0_i32 = arith.constant 0 : i32
    %c0_i32_0 = arith.constant 0 : i32
    %c0_i32_1 = arith.constant 0 : i32
    return %c0_i32, %arg0, %c0_i32_0 : i32, i32, i32
  }
  func.func @transform_1(%arg0: i32) -> (i32, i32, i32, i32) {
    %c0_i32 = arith.constant 0 : i32
    %c0_i32_0 = arith.constant 0 : i32
    %c0_i32_1 = arith.constant 0 : i32
    %c0_i32_2 = arith.constant 0 : i32
    return %arg0, %c0_i32, %c0_i32_0, %c0_i32_1 : i32, i32, i32, i32
  }
  func.func @transform_2(%arg0: i32) -> (i32, i32, i32) {
    %c0_i32 = arith.constant 0 : i32
    %c0_i32_0 = arith.constant 0 : i32
    %c0_i32_1 = arith.constant 0 : i32
    %c0_i32_2 = arith.constant 0 : i32
    return %c0_i32, %c0_i32_0, %c0_i32_1 : i32, i32, i32
  }
  func.func @transform_3(%arg0: i32) -> (i32, i32, i32) {
    %c0_i32 = arith.constant 0 : i32
    %c0_i32_0 = arith.constant 0 : i32
    %c0_i32_1 = arith.constant 0 : i32
    %c0_i32_2 = arith.constant 0 : i32
    return %c0_i32, %c0_i32_0, %c0_i32_1 : i32, i32, i32
  }
  func.func @transform_4(%arg0: i32) -> (i32, i32) {
    %c0_i32 = arith.constant 0 : i32
    %c0_i32_0 = arith.constant 0 : i32
    %c0_i32_1 = arith.constant 0 : i32
    return %c0_i32, %c0_i32_0 : i32, i32
  }
  func.func @transform_5(%arg0: i32) -> (i32, i32) {
    %c0_i32 = arith.constant 0 : i32
    %c0_i32_0 = arith.constant 0 : i32
    return %arg0, %c0_i32 : i32, i32
  }
}

</mosaic_0001>

<llo_original>
// kernel: tpu_custom_call.1
$region0: #{tpu_custom_call.1}
  #allocation0 [shape = 'u32[]', space=smem, size = 0x4, offset = 0x4, fixed_abs, tag = 'smem constant byte address 0x4 - core index']
  #allocation1 [shape = 'u32[144,128]{1,0:T(1,128)}', space=vmem, size = 0x12000, scoped, tag = 'internal scratch']
  %s0 = inlined_call_operand.vmem [shape: f32[3,16,4], index: 0, kind: input, shape index: {}]
  %s1 = inlined_call_operand.vmem [shape: f32[2,2,8,8], index: 1, kind: input, shape index: {}]
  %s2 = inlined_call_operand.vmem [shape: f32[8,4,2], index: 2, kind: input, shape index: {}]
  %s3 = inlined_call_operand.vmem [shape: f32[6,1,2], index: 3, kind: input, shape index: {}]
  %s4 = inlined_call_operand.vmem [shape: f32[1,4], index: 4, kind: input, shape index: {}]
  %s5 = inlined_call_operand.vmem [shape: f32[16,4], index: 5, kind: output, shape index: {}]
  %s6 = sld [smem:[#allocation0]]
  $region91: #{tpu_custom_call.1} parent=0
    _
  %s8 = ssub.s32 1, %s6
  %s9 = scalar_select 0, %s8, %s6
  $region1: #{tpu_custom_call.1} parent=0
    #allocation2 [shape = 'u8[24576]{0}', space=vmem, size = 0x6000, scoped, tag = 'input window, operand 0']
    loop: start=0, step=1, limit=4
    $region2: #{tpu_custom_call.1} parent=1 // loop_pre_header
      _
    $region3: #{tpu_custom_call.1} parent=1 // loop_header
      %s11 = sphi 0, %s15
      %p12 = scmp.ge.s32.totalorder %s11, 4
      %s21 = sphi 0, %s23
      %s24 = sphi 0, %s21
      %s25 = sphi 0, %s24
      %s41 = sphi 0, %s25
      %s47 = sphi 0, %s49
      %s50 = sphi 0, %s47
      %s51 = sphi 0, %s50
      %s67 = sphi 0, %s51
      %s71 = sphi 0, %s71
      %s73 = sphi 0, %s71
      %s74 = sphi 0, %s73
      %s88 = sphi 0, %s74
      %s92 = sphi 0, %s92
      %s94 = sphi 0, %s92
      %s95 = sphi 0, %s94
      %s109 = sphi 0, %s95
      %s113 = sphi 0, %s113
      %s115 = sphi 0, %s113
      %s116 = sphi 0, %s115
      %s130 = sphi 0, %s116
      %s136 = sphi 0, %s138
      %s139 = sphi 0, %s136
      %s140 = sphi 0, %s139
      %s156 = sphi 0, %s140
    $region4: #{tpu_custom_call.1} parent=1 // loop_header_branch
      %14 = sbr.rel (%p12) target = $region8
    $region5: #{tpu_custom_call.1} parent=1 // loop_body
      %s16 = ssub.s32 %s11, 1
      %s17 = ssub.s32 %s11, 2
      %s18 = sadd.s32 %s11, 1
      %s19 = ssub.s32 %s11, %s18
      %p20 = scmp.eq.s32.totalorder %s19, 0
      %s22 = sadd.s32 %s21, 1
      %s23 = scalar_select %p20, %s21, %s22
      %p26 = pneg %p20
      %p27 = scmp.eq.s32.totalorder %s11, 1
      %p28 = por %p26, %p27
      %p29 = scmp.ne.s32.totalorder %s21, %s24
      %p30 = scmp.eq.s32.totalorder %s11, 0
      %p31 = por %p29, %p30
      %p32 = scmp.ne.s32.totalorder %s21, %s24
      %p33 = scmp.eq.s32.totalorder %s16, 1
      %p34 = por %p32, %p33
      %p35 = scmp.ne.s32.totalorder %s24, %s25
      %p36 = scmp.eq.s32.totalorder %s16, 0
      %p37 = por %p35, %p36
      %p38 = scmp.ne.s32.totalorder %s24, %s25
      %p39 = scmp.eq.s32.totalorder %s17, 1
      %p40 = por %p38, %p39
      %p42 = scmp.ne.s32.totalorder %s25, %s41
      %p43 = scmp.eq.s32.totalorder %s17, 0
      %p44 = por %p42, %p43
      %s45 = ssub.s32 %s11, %s18
      %p46 = scmp.eq.s32.totalorder %s45, 0
      %s48 = sadd.s32 %s47, 1
      %s49 = scalar_select %p46, %s47, %s48
      %p52 = pneg %p46
      %p53 = scmp.eq.s32.totalorder %s11, 1
      %p54 = por %p52, %p53
      %p55 = scmp.ne.s32.totalorder %s47, %s50
      %p56 = scmp.eq.s32.totalorder %s11, 0
      %p57 = por %p55, %p56
      %p58 = scmp.ne.s32.totalorder %s47, %s50
      %p59 = scmp.eq.s32.totalorder %s16, 1
      %p60 = por %p58, %p59
      %p61 = scmp.ne.s32.totalorder %s50, %s51
      %p62 = scmp.eq.s32.totalorder %s16, 0
      %p63 = por %p61, %p62
      %p64 = scmp.ne.s32.totalorder %s50, %s51
      %p65 = scmp.eq.s32.totalorder %s17, 1
      %p66 = por %p64, %p65
      %p68 = scmp.ne.s32.totalorder %s51, %s67
      %p69 = scmp.eq.s32.totalorder %s17, 0
      %p70 = por %p68, %p69
      %s72 = sadd.s32 %s71, 1
      %p75 = scmp.eq.s32.totalorder %s11, 1
      %p76 = scmp.ne.s32.totalorder %s71, %s73
      %p77 = scmp.eq.s32.totalorder %s11, 0
      %p78 = por %p76, %p77
      %p79 = scmp.ne.s32.totalorder %s71, %s73
      %p80 = scmp.eq.s32.totalorder %s16, 1
      %p81 = por %p79, %p80
      %p82 = scmp.ne.s32.totalorder %s73, %s74
      %p83 = scmp.eq.s32.totalorder %s16, 0
      %p84 = por %p82, %p83
      %p85 = scmp.ne.s32.totalorder %s73, %s74
      %p86 = scmp.eq.s32.totalorder %s17, 1
      %p87 = por %p85, %p86
      %p89 = scmp.ne.s32.totalorder %s74, %s88
      %p90 = scmp.eq.s32.totalorder %s17, 0
      %p91 = por %p89, %p90
      %s93 = sadd.s32 %s92, 1
      %p96 = scmp.eq.s32.totalorder %s11, 1
      %p97 = scmp.ne.s32.totalorder %s92, %s94
      %p98 = scmp.eq.s32.totalorder %s11, 0
      %p99 = por %p97, %p98
      %p100 = scmp.ne.s32.totalorder %s92, %s94
      %p101 = scmp.eq.s32.totalorder %s16, 1
      %p102 = por %p100, %p101
      %p103 = scmp.ne.s32.totalorder %s94, %s95
      %p104 = scmp.eq.s32.totalorder %s16, 0
      %p105 = por %p103, %p104
      %p106 = scmp.ne.s32.totalorder %s94, %s95
      %p107 = scmp.eq.s32.totalorder %s17, 1
      %p108 = por %p106, %p107
      %p110 = scmp.ne.s32.totalorder %s95, %s109
      %p111 = scmp.eq.s32.totalorder %s17, 0
      %p112 = por %p110, %p111
      %s114 = sadd.s32 %s113, 1
      %p117 = scmp.eq.s32.totalorder %s11, 1
      %p118 = scmp.ne.s32.totalorder %s113, %s115
      %p119 = scmp.eq.s32.totalorder %s11, 0
      %p120 = por %p118, %p119
      %p121 = scmp.ne.s32.totalorder %s113, %s115
      %p122 = scmp.eq.s32.totalorder %s16, 1
      %p123 = por %p121, %p122
      %p124 = scmp.ne.s32.totalorder %s115, %s116
      %p125 = scmp.eq.s32.totalorder %s16, 0
      %p126 = por %p124, %p125
      %p127 = scmp.ne.s32.totalorder %s115, %s116
      %p128 = scmp.eq.s32.totalorder %s17, 1
      %p129 = por %p127, %p128
      %p131 = scmp.ne.s32.totalorder %s116, %s130
      %p132 = scmp.eq.s32.totalorder %s17, 0
      %p133 = por %p131, %p132
      %s134 = ssub.s32 %s11, %s18
      %p135 = scmp.eq.s32.totalorder %s134, 0
      %s137 = sadd.s32 %s136, 1
      %s138 = scalar_select %p135, %s136, %s137
      %p141 = pneg %p135
      %p142 = scmp.eq.s32.totalorder %s11, 1
      %p143 = por %p141, %p142
      %p144 = scmp.ne.s32.totalorder %s136, %s139
      %p145 = scmp.eq.s32.totalorder %s11, 0
      %p146 = por %p144, %p145
      %p147 = scmp.ne.s32.totalorder %s136, %s139
      %p148 = scmp.eq.s32.totalorder %s16, 1
      %p149 = por %p147, %p148
      %p150 = scmp.ne.s32.totalorder %s139, %s140
      %p151 = scmp.eq.s32.totalorder %s16, 0
      %p152 = por %p150, %p151
      %p153 = scmp.ne.s32.totalorder %s139, %s140
      %p154 = scmp.eq.s32.totalorder %s17, 1
      %p155 = por %p153, %p154
      %p157 = scmp.ne.s32.totalorder %s140, %s156
      %p158 = scmp.eq.s32.totalorder %s17, 0
      %p159 = por %p157, %p158
      %p160 = scmp.le.s32.totalorder 1, %s11
      %p161 = scmp.lt.s32.totalorder %s11, 3
      %p162 = pnand %p160, %p161
      %p163 = pneg %p162
      // Predicated region
      $region9: #{tpu_custom_call.1} parent=5 // pred_check
        _
      $region10: #{tpu_custom_call.1} parent=5 // pred_check_branch
        %165 = sbr.rel (%p162) target = $region12
      $region11: #{tpu_custom_call.1} parent=5 // pred_region
        %s166 = ssub.s32 %s11, 1
        // Predicated region
        $region13: #{tpu_custom_call.1} parent=11 // pred_check
          %p167 = pneg %p84
        $region14: #{tpu_custom_call.1} parent=11 // pred_check_branch
          %169 = sbr.rel (%p167) target = $region16
        $region15: #{tpu_custom_call.1} parent=11 // pred_region
          _
        $region16: #{tpu_custom_call.1} parent=11 // pred_fallthru
          _
        // Predicated region
        $region17: #{tpu_custom_call.1} parent=11 // pred_check
          %p170 = pneg %p105
        $region18: #{tpu_custom_call.1} parent=11 // pred_check_branch
          %172 = sbr.rel (%p170) target = $region20
        $region19: #{tpu_custom_call.1} parent=11 // pred_region
          _
        $region20: #{tpu_custom_call.1} parent=11 // pred_fallthru
          _
        // Predicated region
        $region21: #{tpu_custom_call.1} parent=11 // pred_check
          %p173 = pneg %p126
        $region22: #{tpu_custom_call.1} parent=11 // pred_check_branch
          %175 = sbr.rel (%p173) target = $region24
        $region23: #{tpu_custom_call.1} parent=11 // pred_region
          _
        $region24: #{tpu_custom_call.1} parent=11 // pred_fallthru
          _
      $region12: #{tpu_custom_call.1} parent=5 // pred_fallthru
        _
      %p176 = scmp.lt.s32.totalorder %s11, 2
      // Predicated region
      $region25: #{tpu_custom_call.1} parent=5 // pred_check
        %p177 = pneg %p176
      $region26: #{tpu_custom_call.1} parent=5 // pred_check_branch
        %179 = sbr.rel (%p177) target = $region28
      $region27: #{tpu_custom_call.1} parent=5 // pred_region
        // Predicated region
        $region29: #{tpu_custom_call.1} parent=27 // pred_check
          %p180 = pneg %p31
        $region30: #{tpu_custom_call.1} parent=27 // pred_check_branch
          %182 = sbr.rel (%p180) target = $region32
        $region31: #{tpu_custom_call.1} parent=27 // pred_region
          %s183 = sand.u32 %s21, 1
          %s184 = sand.u32 %s21, 1
          %s185 = smul.addr %s184, 24
          %s186 = scalar_lea.vmem [#allocation2], %s185
          %s187 = smul.addr %s11, 8
          %s188 = scalar_lea.vmem %s0, %s187
          // Predicated region
          $region33: #{tpu_custom_call.1} parent=31 // pred_check
            _
          $region34: #{tpu_custom_call.1} parent=31 // pred_check_branch
            %190 = sbr.rel (0) target = $region36
          $region35: #{tpu_custom_call.1} parent=31 // pred_region
            // Predicated region
            $region37: #{tpu_custom_call.1} parent=35 // pred_check
              _
            $region38: #{tpu_custom_call.1} parent=35 // pred_check_branch
              %192 = sbr.rel (0) target = $region40
            $region39: #{tpu_custom_call.1} parent=35 // pred_region
              // Predicated region
              $region52: #{tpu_custom_call.1} parent=39 // pred_check
                _
              $region53: #{tpu_custom_call.1} parent=39 // pred_check_branch
                %211 = sbr.rel (0) target = $region55
              $region54: #{tpu_custom_call.1} parent=39 // pred_region
                loop: start=0, step=1, limit=1
                $region56: #{tpu_custom_call.1} parent=54 // loop_pre_header
                  _
                $region57: #{tpu_custom_call.1} parent=54 // loop_header
                  %s213 = sphi 0, %s217
                  %p214 = scmp.ge.s32.totalorder %s213, 1
                  %s218 = sphi %s188, %s188
                  %s219 = sphi %s186, %s186
                $region58: #{tpu_custom_call.1} parent=54 // loop_header_branch
                  %216 = sbr.rel (%p214) target = $region62
                $region59: #{tpu_custom_call.1} parent=54 // loop_body
                  %v220 = vld [vmem:[%s218] sm:$0xff]
                  %221 = vst [vmem:[%s219] sm:$0xff] %v220
                  %v222 = vld [vmem:[%s218 + $0x10] sm:$0xff]
                  %223 = vst [vmem:[%s219 + $0x8] sm:$0xff] %v222
                  %v224 = vld [vmem:[%s218 + $0x20] sm:$0xff]
                  %225 = vst [vmem:[%s219 + $0x10] sm:$0xff] %v224
                $region60: #{tpu_custom_call.1} parent=54 // loop_footer
                  %s217 = sadd.s32 1, %s213
                $region61: #{tpu_custom_call.1} parent=54 // loop_footer_branch
                  %212 = sbr.rel target = $region57
                $region62: #{tpu_custom_call.1} parent=54 // loop_exit
                  _
              $region55: #{tpu_custom_call.1} parent=39 // pred_fallthru
                _
              // Predicated region
              $region63: #{tpu_custom_call.1} parent=39 // pred_check
                _
              $region64: #{tpu_custom_call.1} parent=39 // pred_check_branch
                %227 = sbr.rel target = $region66
              $region65: #{tpu_custom_call.1} parent=39 // pred_region
                _
              $region66: #{tpu_custom_call.1} parent=39 // pred_fallthru
                _
            $region40: #{tpu_custom_call.1} parent=35 // pred_fallthru
              _
            // Predicated region
            $region41: #{tpu_custom_call.1} parent=35 // pred_check
              _
            $region42: #{tpu_custom_call.1} parent=35 // pred_check_branch
              %194 = sbr.rel target = $region44
            $region43: #{tpu_custom_call.1} parent=35 // pred_region
              loop: start=0, step=1, limit=1
              $region45: #{tpu_custom_call.1} parent=43 // loop_pre_header
                _
              $region46: #{tpu_custom_call.1} parent=43 // loop_header
                %s197 = sphi 0, %s201
                %p198 = scmp.ge.s32.totalorder %s197, 1
                %s202 = sphi %s188, %s188
                %s203 = sphi %s186, %s186
              $region47: #{tpu_custom_call.1} parent=43 // loop_header_branch
                %200 = sbr.rel (%p198) target = $region51
              $region48: #{tpu_custom_call.1} parent=43 // loop_body
                %v204 = vld [vmem:[%s202] sm:$0xff]
                %205 = vst [vmem:[%s203] sm:$0xff] %v204
                %v206 = vld [vmem:[%s202 + $0x10] sm:$0xff]
                %207 = vst [vmem:[%s203 + $0x8] sm:$0xff] %v206
                %v208 = vld [vmem:[%s202 + $0x20] sm:$0xff]
                %209 = vst [vmem:[%s203 + $0x10] sm:$0xff] %v208
              $region49: #{tpu_custom_call.1} parent=43 // loop_footer
                %s201 = sadd.s32 1, %s197
              $region50: #{tpu_custom_call.1} parent=43 // loop_footer_branch
                %196 = sbr.rel target = $region46
              $region51: #{tpu_custom_call.1} parent=43 // loop_exit
                _
            $region44: #{tpu_custom_call.1} parent=35 // pred_fallthru
              _
          $region36: #{tpu_custom_call.1} parent=31 // pred_fallthru
            _
          %228 = vnop
        $region32: #{tpu_custom_call.1} parent=27 // pred_fallthru
          _
        // Predicated region
        $region67: #{tpu_custom_call.1} parent=27 // pred_check
          %p229 = pneg %p57
        $region68: #{tpu_custom_call.1} parent=27 // pred_check_branch
          %231 = sbr.rel (%p229) target = $region70
        $region69: #{tpu_custom_call.1} parent=27 // pred_region
          %p232 = scmp.lt.s32.totalorder %s11, 1
          %s233 = scalar_select %p232, %s11, 1
          %s234 = smul.addr %s233, 2
          %s235 = smul.addr %s234, 8
          %s236 = scalar_lea.vmem %s1, %s235
        $region70: #{tpu_custom_call.1} parent=27 // pred_fallthru
          _
      $region28: #{tpu_custom_call.1} parent=5 // pred_fallthru
        _
      %p237 = scmp.le.s32.totalorder 1, %s11
      %p238 = scmp.lt.s32.totalorder %s11, 3
      %p239 = pnand %p237, %p238
      %p240 = pneg %p239
      // Predicated region
      $region71: #{tpu_custom_call.1} parent=5 // pred_check
        _
      $region72: #{tpu_custom_call.1} parent=5 // pred_check_branch
        %242 = sbr.rel (%p239) target = $region74
      $region73: #{tpu_custom_call.1} parent=5 // pred_region
        %s243 = ssub.s32 %s11, 1
        %s244 = sand.u32 %s24, 1
        %s245 = sand.u32 %s24, 1
        %s246 = smul.addr %s245, 24
        %s247 = scalar_lea.vmem [#allocation2], %s246
        // Predicated region
        $region75: #{tpu_custom_call.1} parent=73 // pred_check
          %p248 = pneg %p37
        $region76: #{tpu_custom_call.1} parent=73 // pred_check_branch
          %250 = sbr.rel (%p248) target = $region78
        $region77: #{tpu_custom_call.1} parent=73 // pred_region
          _
        $region78: #{tpu_custom_call.1} parent=73 // pred_fallthru
          _
        %s251 = sand.u32 %s24, 1
        %s252 = sand.u32 %s24, 1
        %s253 = smul.addr %s252, 24
        %s254 = scalar_lea.vmem [#allocation2], %s253
        %p255 = pneg %p37
        %p256 = pneg %p34
        %p257 = scmp.lt.s32.totalorder %s16, 1
        %s258 = scalar_select %p257, %s16, 1
        %s259 = smul.addr %s258, 2
        %s260 = smul.addr %s259, 8
        %s261 = scalar_lea.vmem %s1, %s260
        %p262 = pneg %p63
        %p263 = pneg %p60
        %p264 = pneg %p84
        %p265 = pneg %p81
        %p266 = pneg %p105
        %p267 = pneg %p102
        %p268 = pneg %p126
        %p269 = pneg %p123
        %p270 = pneg %p152
        %p271 = pneg %p149
        %p272 = scmp.lt.s32.totalorder %s16, 1
        %s273 = scalar_select %p272, %s16, 1
        %s274 = smul.addr %s273, 8
        %s275 = scalar_lea.vmem %s5, %s274
        %p276 = scmp.lt.s32.totalorder %s16, 1
        %s277 = scalar_select %p276, %s16, 1
        %s278 = smul.addr %s277, 2
        %s279 = smul.addr %s278, 8
        %s280 = scalar_lea.vmem %s1, %s279
        %p281 = scmp.lt.s32.totalorder %s16, 1
        %s282 = scalar_select %p281, %s16, 1
        %s283 = smul.addr %s282, 8
        %s284 = scalar_lea.vmem %s5, %s283
        %v285 = vld [vmem:[%s247] sm:$0xff]
        %v286 = vld [vmem:[%s247 + $0x8] sm:$0xff]
        %v287 = vld [vmem:[%s247 + $0x10] sm:$0xff]
        %v288 = vld [vmem:[%s2] sm:$0xf]
        %v289 = vld [vmem:[%s2 + $0x4] sm:$0xf]
        %v290 = vld [vmem:[%s2 + $0x8] sm:$0xf]
        %v291 = vld [vmem:[%s2 + $0xc] sm:$0xf]
        %v292 = vld [vmem:[%s2 + $0x10] sm:$0xf]
        %v293 = vld [vmem:[%s2 + $0x14] sm:$0xf]
        %v294 = vld [vmem:[%s2 + $0x18] sm:$0xf]
        %v295 = vld [vmem:[%s2 + $0x1c] sm:$0xf]
        %v296 = vld [vmem:[%s3] sm:$0x1]
        %v297 = vld [vmem:[%s3 + $0x1] sm:$0x1]
        %v298 = vld [vmem:[%s3 + $0x2] sm:$0x1]
        %v299 = vld [vmem:[%s3 + $0x3] sm:$0x1]
        %v300 = vld [vmem:[%s3 + $0x4] sm:$0x1]
        %v301 = vld [vmem:[%s3 + $0x5] sm:$0x1]
        %v302 = vld [vmem:[%s280] sm:$0xff]
        %v303 = vld [vmem:[%s280 + $0x8] sm:$0xff]
        %v310 = vlaneseq
        %v311 = vshrl.u32 %v310, 7
        %v312 = vsub.s32 0, %v311
        %v313 = vrot.slane %v296, %v312
        %v314 = vlaneseq
        %v315 = vshrl.u32 %v314, 7
        %v316 = vsub.s32 0, %v315
        %v317 = vrot.slane %v297, %v316
        %v318 = vlaneseq
        %v319 = vshrl.u32 %v318, 7
        %v320 = vsub.s32 0, %v319
        %v321 = vrot.slane %v298, %v320
        %v322 = vlaneseq
        %v323 = vshrl.u32 %v322, 7
        %v324 = vsub.s32 0, %v323
        %v325 = vrot.slane %v299, %v324
        %v326 = vlaneseq
        %v327 = vshrl.u32 %v326, 7
        %v328 = vsub.s32 0, %v327
        %v329 = vrot.slane %v300, %v328
        %v330 = vlaneseq
        %v331 = vshrl.u32 %v330, 7
        %v332 = vsub.s32 0, %v331
        %v333 = vrot.slane %v301, %v332
        %vm340 = vcmask 31744
        %v342 = vsel %vm340, %v285, 0
        %vm344 = vcmask 1043456
        %v346 = vsel %vm344, %v288, 0
        %348 = vmatprep.subr.mxu0 0.0
        %349 = vmatpush1.msra.mxu0 %v346
        %350 = vmatprep.subr.mxu0 0.0
        %351 = vmatpush1.msra.mxu0 0.0
        %352 = vmatprep.subr.mxu0 0.0
        %353 = vmatpush1.msra.mxu0 0.0
        %354 = vmatprep.subr.mxu0 0.0
        %355 = vmatpush1.msra.mxu0 0.0
        %356 = vmatprep.subr.mxu0 0.0
        %357 = vmatpush1.msra.mxu0 0.0
        %358 = vmatprep.subr.mxu0 0.0
        %359 = vmatpush1.msra.mxu0 0.0
        %360 = vmatprep.subr.mxu0 0.0
        %361 = vmatpush1.msra.mxu0 0.0
        %362 = vmatprep.subr.mxu0 0.0
        %363 = vmatpush1.msra.mxu0 0.0
        %364 = vmatprep.subr.mxu0 0.0
        %365 = vmatpush1.msra.mxu0 0.0
        %366 = vmatprep.subr.mxu0 0.0
        %367 = vmatpush1.msra.mxu0 0.0
        %368 = vmatprep.subr.mxu0 0.0
        %369 = vmatpush1.msra.mxu0 0.0
        %370 = vmatprep.subr.mxu0 0.0
        %371 = vmatpush1.msra.mxu0 0.0
        %372 = vmatprep.subr.mxu0 0.0
        %373 = vmatpush1.msra.mxu0 0.0
        %374 = vmatprep.subr.mxu0 0.0
        %375 = vmatpush1.msra.mxu0 0.0
        %376 = vmatprep.subr.mxu0 0.0
        %377 = vmatpush1.msra.mxu0 0.0
        %378 = vmatprep.subr.mxu0 0.0
        %379 = vmatpush1.msra.mxu0 0.0
        %380 = vmatprep.subr.mxu0 0.0
        %381 = vmatpush1.msra.mxu0 0.0
        %382 = vmatprep.subr.mxu0 0.0
        %383 = vmatpush1.msra.mxu0 0.0
        %384 = vmatprep.subr.mxu0 0.0
        %385 = vmatpush1.msra.mxu0 0.0
        %386 = vmatprep.subr.mxu0 0.0
        %387 = vmatpush1.msra.mxu0 0.0
        %388 = vmatprep.subr.mxu0 0.0
        %389 = vmatpush1.msra.mxu0 0.0
        %390 = vmatprep.subr.mxu0 0.0
        %391 = vmatpush1.msra.mxu0 0.0
        %392 = vmatprep.subr.mxu0 0.0
        %393 = vmatpush1.msra.mxu0 0.0
        %394 = vmatprep.subr.mxu0 0.0
        %395 = vmatpush1.msra.mxu0 0.0
        %396 = vmatprep.subr.mxu0 0.0
        %397 = vmatpush1.msra.mxu0 0.0
        %398 = vmatprep.subr.mxu0 0.0
        %399 = vmatpush1.msra.mxu0 0.0
        %400 = vmatprep.subr.mxu0 0.0
        %401 = vmatpush1.msra.mxu0 0.0
        %402 = vmatprep.subr.mxu0 0.0
        %403 = vmatpush1.msra.mxu0 0.0
        %404 = vmatprep.subr.mxu0 0.0
        %405 = vmatpush1.msra.mxu0 0.0
        %406 = vmatprep.subr.mxu0 0.0
        %407 = vmatpush1.msra.mxu0 0.0
        %408 = vmatprep.subr.mxu0 0.0
        %409 = vmatpush1.msra.mxu0 0.0
        %410 = vmatprep.subr.mxu0 0.0
        %411 = vmatpush1.msra.mxu0 0.0
        %412 = vmatprep.mubr.f32.mxu0 0.0
        %413 = vmatmul.mubr.f32.gmra.mrb[0].mxu0 %v342
        %v414 = vpop.f32.mrb[0].mxu0
        %v415 = vadd.f32 %v313, %v414
        %v416 = vpop.f32.mrb[0].mxu0
        %417 = vdwg.mxu0
        %v419 = vsel %vm344, %v289, 0
        %421 = vmatprep.subr.mxu0 0.0
        %422 = vmatpush1.msra.mxu0 %v419
        %423 = vmatprep.subr.mxu0 0.0
        %424 = vmatpush1.msra.mxu0 0.0
        %425 = vmatprep.subr.mxu0 0.0
        %426 = vmatpush1.msra.mxu0 0.0
        %427 = vmatprep.subr.mxu0 0.0
        %428 = vmatpush1.msra.mxu0 0.0
        %429 = vmatprep.subr.mxu0 0.0
        %430 = vmatpush1.msra.mxu0 0.0
        %431 = vmatprep.subr.mxu0 0.0
        %432 = vmatpush1.msra.mxu0 0.0
        %433 = vmatprep.subr.mxu0 0.0
        %434 = vmatpush1.msra.mxu0 0.0
        %435 = vmatprep.subr.mxu0 0.0
        %436 = vmatpush1.msra.mxu0 0.0
        %437 = vmatprep.subr.mxu0 0.0
        %438 = vmatpush1.msra.mxu0 0.0
        %439 = vmatprep.subr.mxu0 0.0
        %440 = vmatpush1.msra.mxu0 0.0
        %441 = vmatprep.subr.mxu0 0.0
        %442 = vmatpush1.msra.mxu0 0.0
        %443 = vmatprep.subr.mxu0 0.0
        %444 = vmatpush1.msra.mxu0 0.0
        %445 = vmatprep.subr.mxu0 0.0
        %446 = vmatpush1.msra.mxu0 0.0
        %447 = vmatprep.subr.mxu0 0.0
        %448 = vmatpush1.msra.mxu0 0.0
        %449 = vmatprep.subr.mxu0 0.0
        %450 = vmatpush1.msra.mxu0 0.0
        %451 = vmatprep.subr.mxu0 0.0
        %452 = vmatpush1.msra.mxu0 0.0
        %453 = vmatprep.subr.mxu0 0.0
        %454 = vmatpush1.msra.mxu0 0.0
        %455 = vmatprep.subr.mxu0 0.0
        %456 = vmatpush1.msra.mxu0 0.0
        %457 = vmatprep.subr.mxu0 0.0
        %458 = vmatpush1.msra.mxu0 0.0
        %459 = vmatprep.subr.mxu0 0.0
        %460 = vmatpush1.msra.mxu0 0.0
        %461 = vmatprep.subr.mxu0 0.0
        %462 = vmatpush1.msra.mxu0 0.0
        %463 = vmatprep.subr.mxu0 0.0
        %464 = vmatpush1.msra.mxu0 0.0
        %465 = vmatprep.subr.mxu0 0.0
        %466 = vmatpush1.msra.mxu0 0.0
        %467 = vmatprep.subr.mxu0 0.0
        %468 = vmatpush1.msra.mxu0 0.0
        %469 = vmatprep.subr.mxu0 0.0
        %470 = vmatpush1.msra.mxu0 0.0
        %471 = vmatprep.subr.mxu0 0.0
        %472 = vmatpush1.msra.mxu0 0.0
        %473 = vmatprep.subr.mxu0 0.0
        %474 = vmatpush1.msra.mxu0 0.0
        %475 = vmatprep.subr.mxu0 0.0
        %476 = vmatpush1.msra.mxu0 0.0
        %477 = vmatprep.subr.mxu0 0.0
        %478 = vmatpush1.msra.mxu0 0.0
        %479 = vmatprep.subr.mxu0 0.0
        %480 = vmatpush1.msra.mxu0 0.0
        %481 = vmatprep.subr.mxu0 0.0
        %482 = vmatpush1.msra.mxu0 0.0
        %483 = vmatprep.subr.mxu0 0.0
        %484 = vmatpush1.msra.mxu0 0.0
        %485 = vmatprep.mubr.f32.mxu0 0.0
        %486 = vmatmul.mubr.f32.gmra.mrb[0].mxu0 %v342
        %v487 = vpop.f32.mrb[0].mxu0
        %v488 = vadd.f32 %v317, %v487
        %v489 = vpop.f32.mrb[0].mxu0
        %490 = vdwg.mxu0
        %v492 = vsel %vm340, %v286, 0
        %v495 = vsel %vm344, %v290, 0
        %497 = vmatprep.subr.mxu0 0.0
        %498 = vmatpush1.msra.mxu0 %v495
        %499 = vmatprep.subr.mxu0 0.0
        %500 = vmatpush1.msra.mxu0 0.0
        %501 = vmatprep.subr.mxu0 0.0
        %502 = vmatpush1.msra.mxu0 0.0
        %503 = vmatprep.subr.mxu0 0.0
        %504 = vmatpush1.msra.mxu0 0.0
        %505 = vmatprep.subr.mxu0 0.0
        %506 = vmatpush1.msra.mxu0 0.0
        %507 = vmatprep.subr.mxu0 0.0
        %508 = vmatpush1.msra.mxu0 0.0
        %509 = vmatprep.subr.mxu0 0.0
        %510 = vmatpush1.msra.mxu0 0.0
        %511 = vmatprep.subr.mxu0 0.0
        %512 = vmatpush1.msra.mxu0 0.0
        %513 = vmatprep.subr.mxu0 0.0
        %514 = vmatpush1.msra.mxu0 0.0
        %515 = vmatprep.subr.mxu0 0.0
        %516 = vmatpush1.msra.mxu0 0.0
        %517 = vmatprep.subr.mxu0 0.0
        %518 = vmatpush1.msra.mxu0 0.0
        %519 = vmatprep.subr.mxu0 0.0
        %520 = vmatpush1.msra.mxu0 0.0
        %521 = vmatprep.subr.mxu0 0.0
        %522 = vmatpush1.msra.mxu0 0.0
        %523 = vmatprep.subr.mxu0 0.0
        %524 = vmatpush1.msra.mxu0 0.0
        %525 = vmatprep.subr.mxu0 0.0
        %526 = vmatpush1.msra.mxu0 0.0
        %527 = vmatprep.subr.mxu0 0.0
        %528 = vmatpush1.msra.mxu0 0.0
        %529 = vmatprep.subr.mxu0 0.0
        %530 = vmatpush1.msra.mxu0 0.0
        %531 = vmatprep.subr.mxu0 0.0
        %532 = vmatpush1.msra.mxu0 0.0
        %533 = vmatprep.subr.mxu0 0.0
        %534 = vmatpush1.msra.mxu0 0.0
        %535 = vmatprep.subr.mxu0 0.0
        %536 = vmatpush1.msra.mxu0 0.0
        %537 = vmatprep.subr.mxu0 0.0
        %538 = vmatpush1.msra.mxu0 0.0
        %539 = vmatprep.subr.mxu0 0.0
        %540 = vmatpush1.msra.mxu0 0.0
        %541 = vmatprep.subr.mxu0 0.0
        %542 = vmatpush1.msra.mxu0 0.0
        %543 = vmatprep.subr.mxu0 0.0
        %544 = vmatpush1.msra.mxu0 0.0
        %545 = vmatprep.subr.mxu0 0.0
        %546 = vmatpush1.msra.mxu0 0.0
        %547 = vmatprep.subr.mxu0 0.0
        %548 = vmatpush1.msra.mxu0 0.0
        %549 = vmatprep.subr.mxu0 0.0
        %550 = vmatpush1.msra.mxu0 0.0
        %551 = vmatprep.subr.mxu0 0.0
        %552 = vmatpush1.msra.mxu0 0.0
        %553 = vmatprep.subr.mxu0 0.0
        %554 = vmatpush1.msra.mxu0 0.0
        %555 = vmatprep.subr.mxu0 0.0
        %556 = vmatpush1.msra.mxu0 0.0
        %557 = vmatprep.subr.mxu0 0.0
        %558 = vmatpush1.msra.mxu0 0.0
        %559 = vmatprep.subr.mxu0 0.0
        %560 = vmatpush1.msra.mxu0 0.0
        %561 = vmatprep.mubr.f32.mxu0 0.0
        %562 = vmatmul.mubr.f32.gmra.mrb[0].mxu0 %v492
        %v563 = vpop.f32.mrb[0].mxu0
        %v564 = vadd.f32 %v321, %v563
        %v565 = vpop.f32.mrb[0].mxu0
        %566 = vdwg.mxu0
        %v568 = vsel %vm344, %v291, 0
        %570 = vmatprep.subr.mxu0 0.0
        %571 = vmatpush1.msra.mxu0 %v568
        %572 = vmatprep.subr.mxu0 0.0
        %573 = vmatpush1.msra.mxu0 0.0
        %574 = vmatprep.subr.mxu0 0.0
        %575 = vmatpush1.msra.mxu0 0.0
        %576 = vmatprep.subr.mxu0 0.0
        %577 = vmatpush1.msra.mxu0 0.0
        %578 = vmatprep.subr.mxu0 0.0
        %579 = vmatpush1.msra.mxu0 0.0
        %580 = vmatprep.subr.mxu0 0.0
        %581 = vmatpush1.msra.mxu0 0.0
        %582 = vmatprep.subr.mxu0 0.0
        %583 = vmatpush1.msra.mxu0 0.0
        %584 = vmatprep.subr.mxu0 0.0
        %585 = vmatpush1.msra.mxu0 0.0
        %586 = vmatprep.subr.mxu0 0.0
        %587 = vmatpush1.msra.mxu0 0.0
        %588 = vmatprep.subr.mxu0 0.0
        %589 = vmatpush1.msra.mxu0 0.0
        %590 = vmatprep.subr.mxu0 0.0
        %591 = vmatpush1.msra.mxu0 0.0
        %592 = vmatprep.subr.mxu0 0.0
        %593 = vmatpush1.msra.mxu0 0.0
        %594 = vmatprep.subr.mxu0 0.0
        %595 = vmatpush1.msra.mxu0 0.0
        %596 = vmatprep.subr.mxu0 0.0
        %597 = vmatpush1.msra.mxu0 0.0
        %598 = vmatprep.subr.mxu0 0.0
        %599 = vmatpush1.msra.mxu0 0.0
        %600 = vmatprep.subr.mxu0 0.0
        %601 = vmatpush1.msra.mxu0 0.0
        %602 = vmatprep.subr.mxu0 0.0
        %603 = vmatpush1.msra.mxu0 0.0
        %604 = vmatprep.subr.mxu0 0.0
        %605 = vmatpush1.msra.mxu0 0.0
        %606 = vmatprep.subr.mxu0 0.0
        %607 = vmatpush1.msra.mxu0 0.0
        %608 = vmatprep.subr.mxu0 0.0
        %609 = vmatpush1.msra.mxu0 0.0
        %610 = vmatprep.subr.mxu0 0.0
        %611 = vmatpush1.msra.mxu0 0.0
        %612 = vmatprep.subr.mxu0 0.0
        %613 = vmatpush1.msra.mxu0 0.0
        %614 = vmatprep.subr.mxu0 0.0
        %615 = vmatpush1.msra.mxu0 0.0
        %616 = vmatprep.subr.mxu0 0.0
        %617 = vmatpush1.msra.mxu0 0.0
        %618 = vmatprep.subr.mxu0 0.0
        %619 = vmatpush1.msra.mxu0 0.0
        %620 = vmatprep.subr.mxu0 0.0
        %621 = vmatpush1.msra.mxu0 0.0
        %622 = vmatprep.subr.mxu0 0.0
        %623 = vmatpush1.msra.mxu0 0.0
        %624 = vmatprep.subr.mxu0 0.0
        %625 = vmatpush1.msra.mxu0 0.0
        %626 = vmatprep.subr.mxu0 0.0
        %627 = vmatpush1.msra.mxu0 0.0
        %628 = vmatprep.subr.mxu0 0.0
        %629 = vmatpush1.msra.mxu0 0.0
        %630 = vmatprep.subr.mxu0 0.0
        %631 = vmatpush1.msra.mxu0 0.0
        %632 = vmatprep.subr.mxu0 0.0
        %633 = vmatpush1.msra.mxu0 0.0
        %634 = vmatprep.mubr.f32.mxu0 0.0
        %635 = vmatmul.mubr.f32.gmra.mrb[0].mxu0 %v492
        %v636 = vpop.f32.mrb[0].mxu0
        %v637 = vadd.f32 %v325, %v636
        %v638 = vpop.f32.mrb[0].mxu0
        %639 = vdwg.mxu0
        %v641 = vsel %vm340, %v287, 0
        %v644 = vsel %vm344, %v292, 0
        %646 = vmatprep.subr.mxu0 0.0
        %647 = vmatpush1.msra.mxu0 %v644
        %648 = vmatprep.subr.mxu0 0.0
        %649 = vmatpush1.msra.mxu0 0.0
        %650 = vmatprep.subr.mxu0 0.0
        %651 = vmatpush1.msra.mxu0 0.0
        %652 = vmatprep.subr.mxu0 0.0
        %653 = vmatpush1.msra.mxu0 0.0
        %654 = vmatprep.subr.mxu0 0.0
        %655 = vmatpush1.msra.mxu0 0.0
        %656 = vmatprep.subr.mxu0 0.0
        %657 = vmatpush1.msra.mxu0 0.0
        %658 = vmatprep.subr.mxu0 0.0
        %659 = vmatpush1.msra.mxu0 0.0
        %660 = vmatprep.subr.mxu0 0.0
        %661 = vmatpush1.msra.mxu0 0.0
        %662 = vmatprep.subr.mxu0 0.0
        %663 = vmatpush1.msra.mxu0 0.0
        %664 = vmatprep.subr.mxu0 0.0
        %665 = vmatpush1.msra.mxu0 0.0
        %666 = vmatprep.subr.mxu0 0.0
        %667 = vmatpush1.msra.mxu0 0.0
        %668 = vmatprep.subr.mxu0 0.0
        %669 = vmatpush1.msra.mxu0 0.0
        %670 = vmatprep.subr.mxu0 0.0
        %671 = vmatpush1.msra.mxu0 0.0
        %672 = vmatprep.subr.mxu0 0.0
        %673 = vmatpush1.msra.mxu0 0.0
        %674 = vmatprep.subr.mxu0 0.0
        %675 = vmatpush1.msra.mxu0 0.0
        %676 = vmatprep.subr.mxu0 0.0
        %677 = vmatpush1.msra.mxu0 0.0
        %678 = vmatprep.subr.mxu0 0.0
        %679 = vmatpush1.msra.mxu0 0.0
        %680 = vmatprep.subr.mxu0 0.0
        %681 = vmatpush1.msra.mxu0 0.0
        %682 = vmatprep.subr.mxu0 0.0
        %683 = vmatpush1.msra.mxu0 0.0
        %684 = vmatprep.subr.mxu0 0.0
        %685 = vmatpush1.msra.mxu0 0.0
        %686 = vmatprep.subr.mxu0 0.0
        %687 = vmatpush1.msra.mxu0 0.0
        %688 = vmatprep.subr.mxu0 0.0
        %689 = vmatpush1.msra.mxu0 0.0
        %690 = vmatprep.subr.mxu0 0.0
        %691 = vmatpush1.msra.mxu0 0.0
        %692 = vmatprep.subr.mxu0 0.0
        %693 = vmatpush1.msra.mxu0 0.0
        %694 = vmatprep.subr.mxu0 0.0
        %695 = vmatpush1.msra.mxu0 0.0
        %696 = vmatprep.subr.mxu0 0.0
        %697 = vmatpush1.msra.mxu0 0.0
        %698 = vmatprep.subr.mxu0 0.0
        %699 = vmatpush1.msra.mxu0 0.0
        %700 = vmatprep.subr.mxu0 0.0
        %701 = vmatpush1.msra.mxu0 0.0
        %702 = vmatprep.subr.mxu0 0.0
        %703 = vmatpush1.msra.mxu0 0.0
        %704 = vmatprep.subr.mxu0 0.0
        %705 = vmatpush1.msra.mxu0 0.0
        %706 = vmatprep.subr.mxu0 0.0
        %707 = vmatpush1.msra.mxu0 0.0
        %708 = vmatprep.subr.mxu0 0.0
        %709 = vmatpush1.msra.mxu0 0.0
        %710 = vmatprep.mubr.f32.mxu0 0.0
        %711 = vmatmul.mubr.f32.gmra.mrb[0].mxu0 %v641
        %v712 = vpop.f32.mrb[0].mxu0
        %v713 = vadd.f32 %v329, %v712
        %v714 = vpop.f32.mrb[0].mxu0
        %715 = vdwg.mxu0
        %v717 = vsel %vm344, %v293, 0
        %719 = vmatprep.subr.mxu0 0.0
        %720 = vmatpush1.msra.mxu0 %v717
        %721 = vmatprep.subr.mxu0 0.0
        %722 = vmatpush1.msra.mxu0 0.0
        %723 = vmatprep.subr.mxu0 0.0
        %724 = vmatpush1.msra.mxu0 0.0
        %725 = vmatprep.subr.mxu0 0.0
        %726 = vmatpush1.msra.mxu0 0.0
        %727 = vmatprep.subr.mxu0 0.0
        %728 = vmatpush1.msra.mxu0 0.0
        %729 = vmatprep.subr.mxu0 0.0
        %730 = vmatpush1.msra.mxu0 0.0
        %731 = vmatprep.subr.mxu0 0.0
        %732 = vmatpush1.msra.mxu0 0.0
        %733 = vmatprep.subr.mxu0 0.0
        %734 = vmatpush1.msra.mxu0 0.0
        %735 = vmatprep.subr.mxu0 0.0
        %736 = vmatpush1.msra.mxu0 0.0
        %737 = vmatprep.subr.mxu0 0.0
        %738 = vmatpush1.msra.mxu0 0.0
        %739 = vmatprep.subr.mxu0 0.0
        %740 = vmatpush1.msra.mxu0 0.0
        %741 = vmatprep.subr.mxu0 0.0
        %742 = vmatpush1.msra.mxu0 0.0
        %743 = vmatprep.subr.mxu0 0.0
        %744 = vmatpush1.msra.mxu0 0.0
        %745 = vmatprep.subr.mxu0 0.0
        %746 = vmatpush1.msra.mxu0 0.0
        %747 = vmatprep.subr.mxu0 0.0
        %748 = vmatpush1.msra.mxu0 0.0
        %749 = vmatprep.subr.mxu0 0.0
        %750 = vmatpush1.msra.mxu0 0.0
        %751 = vmatprep.subr.mxu0 0.0
        %752 = vmatpush1.msra.mxu0 0.0
        %753 = vmatprep.subr.mxu0 0.0
        %754 = vmatpush1.msra.mxu0 0.0
        %755 = vmatprep.subr.mxu0 0.0
        %756 = vmatpush1.msra.mxu0 0.0
        %757 = vmatprep.subr.mxu0 0.0
        %758 = vmatpush1.msra.mxu0 0.0
        %759 = vmatprep.subr.mxu0 0.0
        %760 = vmatpush1.msra.mxu0 0.0
        %761 = vmatprep.subr.mxu0 0.0
        %762 = vmatpush1.msra.mxu0 0.0
        %763 = vmatprep.subr.mxu0 0.0
        %764 = vmatpush1.msra.mxu0 0.0
        %765 = vmatprep.subr.mxu0 0.0
        %766 = vmatpush1.msra.mxu0 0.0
        %767 = vmatprep.subr.mxu0 0.0
        %768 = vmatpush1.msra.mxu0 0.0
        %769 = vmatprep.subr.mxu0 0.0
        %770 = vmatpush1.msra.mxu0 0.0
        %771 = vmatprep.subr.mxu0 0.0
        %772 = vmatpush1.msra.mxu0 0.0
        %773 = vmatprep.subr.mxu0 0.0
        %774 = vmatpush1.msra.mxu0 0.0
        %775 = vmatprep.subr.mxu0 0.0
        %776 = vmatpush1.msra.mxu0 0.0
        %777 = vmatprep.subr.mxu0 0.0
        %778 = vmatpush1.msra.mxu0 0.0
        %779 = vmatprep.subr.mxu0 0.0
        %780 = vmatpush1.msra.mxu0 0.0
        %781 = vmatprep.subr.mxu0 0.0
        %782 = vmatpush1.msra.mxu0 0.0
        %783 = vmatprep.mubr.f32.mxu0 0.0
        %784 = vmatmul.mubr.f32.gmra.mrb[0].mxu0 %v641
        %v785 = vpop.f32.mrb[0].mxu0
        %v786 = vadd.f32 %v333, %v785
        %v787 = vpop.f32.mrb[0].mxu0
        %788 = vdwg.mxu0
        %vm789 = vcmask 15360
        %v791 = vsel %vm789, %v415, 0
        %v794 = vsel %vm789, %v564, 0
        %796 = vmatprep.subr.mxu0 0.0
        %797 = vmatpush1.xpose.msra.mxu0 %v794
        %798 = vmatprep.subr.mxu0 0.0
        %799 = vmatpush1.xpose.msra.mxu0 0.0
        %800 = vmatprep.subr.mxu0 0.0
        %801 = vmatpush1.xpose.msra.mxu0 0.0
        %802 = vmatprep.subr.mxu0 0.0
        %803 = vmatpush1.xpose.msra.mxu0 0.0
        %804 = vmatprep.subr.mxu0 0.0
        %805 = vmatpush1.xpose.msra.mxu0 0.0
        %806 = vmatprep.subr.mxu0 0.0
        %807 = vmatpush1.xpose.msra.mxu0 0.0
        %808 = vmatprep.subr.mxu0 0.0
        %809 = vmatpush1.xpose.msra.mxu0 0.0
        %810 = vmatprep.subr.mxu0 0.0
        %811 = vmatpush1.xpose.msra.mxu0 0.0
        %812 = vmatprep.subr.mxu0 0.0
        %813 = vmatpush1.xpose.msra.mxu0 0.0
        %814 = vmatprep.subr.mxu0 0.0
        %815 = vmatpush1.xpose.msra.mxu0 0.0
        %816 = vmatprep.subr.mxu0 0.0
        %817 = vmatpush1.xpose.msra.mxu0 0.0
        %818 = vmatprep.subr.mxu0 0.0
        %819 = vmatpush1.xpose.msra.mxu0 0.0
        %820 = vmatprep.subr.mxu0 0.0
        %821 = vmatpush1.xpose.msra.mxu0 0.0
        %822 = vmatprep.subr.mxu0 0.0
        %823 = vmatpush1.xpose.msra.mxu0 0.0
        %824 = vmatprep.subr.mxu0 0.0
        %825 = vmatpush1.xpose.msra.mxu0 0.0
        %826 = vmatprep.subr.mxu0 0.0
        %827 = vmatpush1.xpose.msra.mxu0 0.0
        %828 = vmatprep.subr.mxu0 0.0
        %829 = vmatpush1.xpose.msra.mxu0 0.0
        %830 = vmatprep.subr.mxu0 0.0
        %831 = vmatpush1.xpose.msra.mxu0 0.0
        %832 = vmatprep.subr.mxu0 0.0
        %833 = vmatpush1.xpose.msra.mxu0 0.0
        %834 = vmatprep.subr.mxu0 0.0
        %835 = vmatpush1.xpose.msra.mxu0 0.0
        %836 = vmatprep.subr.mxu0 0.0
        %837 = vmatpush1.xpose.msra.mxu0 0.0
        %838 = vmatprep.subr.mxu0 0.0
        %839 = vmatpush1.xpose.msra.mxu0 0.0
        %840 = vmatprep.subr.mxu0 0.0
        %841 = vmatpush1.xpose.msra.mxu0 0.0
        %842 = vmatprep.subr.mxu0 0.0
        %843 = vmatpush1.xpose.msra.mxu0 0.0
        %844 = vmatprep.subr.mxu0 0.0
        %845 = vmatpush1.xpose.msra.mxu0 0.0
        %846 = vmatprep.subr.mxu0 0.0
        %847 = vmatpush1.xpose.msra.mxu0 0.0
        %848 = vmatprep.subr.mxu0 0.0
        %849 = vmatpush1.xpose.msra.mxu0 0.0
        %850 = vmatprep.subr.mxu0 0.0
        %851 = vmatpush1.xpose.msra.mxu0 0.0
        %852 = vmatprep.subr.mxu0 0.0
        %853 = vmatpush1.xpose.msra.mxu0 0.0
        %854 = vmatprep.subr.mxu0 0.0
        %855 = vmatpush1.xpose.msra.mxu0 0.0
        %856 = vmatprep.subr.mxu0 0.0
        %857 = vmatpush1.xpose.msra.mxu0 0.0
        %858 = vmatprep.subr.mxu0 0.0
        %859 = vmatpush1.xpose.msra.mxu0 0.0
        %860 = vmatprep.mubr.f32.mxu0 0.0
        %861 = vmatmul.mubr.f32.gmra.mrb[0].mxu0 %v791
        %v862 = vpop.f32.mrb[0].mxu0
        %v863 = vadd.f32 0.0, %v862
        %v864 = vpop.f32.mrb[0].mxu0
        %865 = vdwg.mxu0
        %v867 = vsel %vm789, %v488, 0
        %v870 = vsel %vm789, %v637, 0
        %872 = vmatprep.subr.mxu0 0.0
        %873 = vmatpush1.xpose.msra.mxu0 %v870
        %874 = vmatprep.subr.mxu0 0.0
        %875 = vmatpush1.xpose.msra.mxu0 0.0
        %876 = vmatprep.subr.mxu0 0.0
        %877 = vmatpush1.xpose.msra.mxu0 0.0
        %878 = vmatprep.subr.mxu0 0.0
        %879 = vmatpush1.xpose.msra.mxu0 0.0
        %880 = vmatprep.subr.mxu0 0.0
        %881 = vmatpush1.xpose.msra.mxu0 0.0
        %882 = vmatprep.subr.mxu0 0.0
        %883 = vmatpush1.xpose.msra.mxu0 0.0
        %884 = vmatprep.subr.mxu0 0.0
        %885 = vmatpush1.xpose.msra.mxu0 0.0
        %886 = vmatprep.subr.mxu0 0.0
        %887 = vmatpush1.xpose.msra.mxu0 0.0
        %888 = vmatprep.subr.mxu0 0.0
        %889 = vmatpush1.xpose.msra.mxu0 0.0
        %890 = vmatprep.subr.mxu0 0.0
        %891 = vmatpush1.xpose.msra.mxu0 0.0
        %892 = vmatprep.subr.mxu0 0.0
        %893 = vmatpush1.xpose.msra.mxu0 0.0
        %894 = vmatprep.subr.mxu0 0.0
        %895 = vmatpush1.xpose.msra.mxu0 0.0
        %896 = vmatprep.subr.mxu0 0.0
        %897 = vmatpush1.xpose.msra.mxu0 0.0
        %898 = vmatprep.subr.mxu0 0.0
        %899 = vmatpush1.xpose.msra.mxu0 0.0
        %900 = vmatprep.subr.mxu0 0.0
        %901 = vmatpush1.xpose.msra.mxu0 0.0
        %902 = vmatprep.subr.mxu0 0.0
        %903 = vmatpush1.xpose.msra.mxu0 0.0
        %904 = vmatprep.subr.mxu0 0.0
        %905 = vmatpush1.xpose.msra.mxu0 0.0
        %906 = vmatprep.subr.mxu0 0.0
        %907 = vmatpush1.xpose.msra.mxu0 0.0
        %908 = vmatprep.subr.mxu0 0.0
        %909 = vmatpush1.xpose.msra.mxu0 0.0
        %910 = vmatprep.subr.mxu0 0.0
        %911 = vmatpush1.xpose.msra.mxu0 0.0
        %912 = vmatprep.subr.mxu0 0.0
        %913 = vmatpush1.xpose.msra.mxu0 0.0
        %914 = vmatprep.subr.mxu0 0.0
        %915 = vmatpush1.xpose.msra.mxu0 0.0
        %916 = vmatprep.subr.mxu0 0.0
        %917 = vmatpush1.xpose.msra.mxu0 0.0
        %918 = vmatprep.subr.mxu0 0.0
        %919 = vmatpush1.xpose.msra.mxu0 0.0
        %920 = vmatprep.subr.mxu0 0.0
        %921 = vmatpush1.xpose.msra.mxu0 0.0
        %922 = vmatprep.subr.mxu0 0.0
        %923 = vmatpush1.xpose.msra.mxu0 0.0
        %924 = vmatprep.subr.mxu0 0.0
        %925 = vmatpush1.xpose.msra.mxu0 0.0
        %926 = vmatprep.subr.mxu0 0.0
        %927 = vmatpush1.xpose.msra.mxu0 0.0
        %928 = vmatprep.subr.mxu0 0.0
        %929 = vmatpush1.xpose.msra.mxu0 0.0
        %930 = vmatprep.subr.mxu0 0.0
        %931 = vmatpush1.xpose.msra.mxu0 0.0
        %932 = vmatprep.subr.mxu0 0.0
        %933 = vmatpush1.xpose.msra.mxu0 0.0
        %934 = vmatprep.subr.mxu0 0.0
        %935 = vmatpush1.xpose.msra.mxu0 0.0
        %936 = vmatprep.mubr.f32.mxu0 0.0
        %937 = vmatmul.mubr.f32.gmra.mrb[0].mxu0 %v867
        %v938 = vpop.f32.mrb[0].mxu0
        %v939 = vadd.f32 0.0, %v938
        %v940 = vpop.f32.mrb[0].mxu0
        %941 = vdwg.mxu0
        %v942 = vmul.f32 %v863, %v302
        %v943 = vmul.f32 %v939, %v302
        %v944 = vadd.f32 %v942, %v303
        %v945 = vadd.f32 %v943, %v303
        %vm946 = vcmask 64512
        %v947 = vsel %vm946, %v944, -inf
        %948 = vmax.xlane.f32.xlu0 %v947
        %v949 = vpop.xlane.xlu0 %948
        %v950 = vsel %vm946, %v945, -inf
        %951 = vmax.xlane.f32.xlu0 %v950
        %v952 = vpop.xlane.xlu0 %951
        %v953 = vsub.f32 %v944, %v949
        %v954 = vsub.f32 %v945, %v952
        %v955 = vmul.f32 %v953, 1.442695
        %v956 = vpow.pop %v955
        %v957 = vmul.f32 %v954, 1.442695
        %v958 = vpow.pop %v957
        %v959 = vsel %vm946, %v956, 0.0
        %960 = vadd.xlane.f32.xlu0 %v959
        %v961 = vpop.xlane.xlu0 %960
        %v962 = vsel %vm946, %v958, 0.0
        %963 = vadd.xlane.f32.xlu0 %v962
        %v964 = vpop.xlane.xlu0 %963
        %v965 = vrcp.pop %v961
        %v966 = vmul.f32 %v956, %v965
        %v967 = vrcp.pop %v964
        %v968 = vmul.f32 %v958, %v967
        %v970 = vsel %vm946, %v966, 0
        %972 = vmatprep.subr.mxu0 0.0
        %973 = vmatpush1.msra.mxu0 %v713
        %974 = vmatprep.subr.mxu0 0.0
        %975 = vmatpush1.msra.mxu0 0.0
        %976 = vmatprep.subr.mxu0 0.0
        %977 = vmatpush1.msra.mxu0 0.0
        %978 = vmatprep.subr.mxu0 0.0
        %979 = vmatpush1.msra.mxu0 0.0
        %980 = vmatprep.subr.mxu0 0.0
        %981 = vmatpush1.msra.mxu0 0.0
        %982 = vmatprep.subr.mxu0 0.0
        %983 = vmatpush1.msra.mxu0 0.0
        %984 = vmatprep.subr.mxu0 0.0
        %985 = vmatpush1.msra.mxu0 0.0
        %986 = vmatprep.subr.mxu0 0.0
        %987 = vmatpush1.msra.mxu0 0.0
        %988 = vmatprep.subr.mxu0 0.0
        %989 = vmatpush1.msra.mxu0 0.0
        %990 = vmatprep.subr.mxu0 0.0
        %991 = vmatpush1.msra.mxu0 0.0
        %992 = vmatprep.subr.mxu0 0.0
        %993 = vmatpush1.msra.mxu0 0.0
        %994 = vmatprep.subr.mxu0 0.0
        %995 = vmatpush1.msra.mxu0 0.0
        %996 = vmatprep.subr.mxu0 0.0
        %997 = vmatpush1.msra.mxu0 0.0
        %998 = vmatprep.subr.mxu0 0.0
        %999 = vmatpush1.msra.mxu0 0.0
        %1000 = vmatprep.subr.mxu0 0.0
        %1001 = vmatpush1.msra.mxu0 0.0
        %1002 = vmatprep.subr.mxu0 0.0
        %1003 = vmatpush1.msra.mxu0 0.0
        %1004 = vmatprep.subr.mxu0 0.0
        %1005 = vmatpush1.msra.mxu0 0.0
        %1006 = vmatprep.subr.mxu0 0.0
        %1007 = vmatpush1.msra.mxu0 0.0
        %1008 = vmatprep.subr.mxu0 0.0
        %1009 = vmatpush1.msra.mxu0 0.0
        %1010 = vmatprep.subr.mxu0 0.0
        %1011 = vmatpush1.msra.mxu0 0.0
        %1012 = vmatprep.subr.mxu0 0.0
        %1013 = vmatpush1.msra.mxu0 0.0
        %1014 = vmatprep.subr.mxu0 0.0
        %1015 = vmatpush1.msra.mxu0 0.0
        %1016 = vmatprep.subr.mxu0 0.0
        %1017 = vmatpush1.msra.mxu0 0.0
        %1018 = vmatprep.subr.mxu0 0.0
        %1019 = vmatpush1.msra.mxu0 0.0
        %1020 = vmatprep.subr.mxu0 0.0
        %1021 = vmatpush1.msra.mxu0 0.0
        %1022 = vmatprep.subr.mxu0 0.0
        %1023 = vmatpush1.msra.mxu0 0.0
        %1024 = vmatprep.subr.mxu0 0.0
        %1025 = vmatpush1.msra.mxu0 0.0
        %1026 = vmatprep.subr.mxu0 0.0
        %1027 = vmatpush1.msra.mxu0 0.0
        %1028 = vmatprep.subr.mxu0 0.0
        %1029 = vmatpush1.msra.mxu0 0.0
        %1030 = vmatprep.subr.mxu0 0.0
        %1031 = vmatpush1.msra.mxu0 0.0
        %1032 = vmatprep.subr.mxu0 0.0
        %1033 = vmatpush1.msra.mxu0 0.0
        %1034 = vmatprep.subr.mxu0 0.0
        %1035 = vmatpush1.msra.mxu0 0.0
        %1036 = vmatprep.mubr.f32.mxu0 0.0
        %1037 = vmatmul.mubr.f32.gmra.mrb[0].mxu0 %v970
        %v1038 = vpop.f32.mrb[0].mxu0
        %v1039 = vadd.f32 0.0, %v1038
        %v1040 = vpop.f32.mrb[0].mxu0
        %1041 = vdwg.mxu0
        %v1043 = vsel %vm946, %v968, 0
        %1045 = vmatprep.subr.mxu0 0.0
        %1046 = vmatpush1.msra.mxu0 %v786
        %1047 = vmatprep.subr.mxu0 0.0
        %1048 = vmatpush1.msra.mxu0 0.0
        %1049 = vmatprep.subr.mxu0 0.0
        %1050 = vmatpush1.msra.mxu0 0.0
        %1051 = vmatprep.subr.mxu0 0.0
        %1052 = vmatpush1.msra.mxu0 0.0
        %1053 = vmatprep.subr.mxu0 0.0
        %1054 = vmatpush1.msra.mxu0 0.0
        %1055 = vmatprep.subr.mxu0 0.0
        %1056 = vmatpush1.msra.mxu0 0.0
        %1057 = vmatprep.subr.mxu0 0.0
        %1058 = vmatpush1.msra.mxu0 0.0
        %1059 = vmatprep.subr.mxu0 0.0
        %1060 = vmatpush1.msra.mxu0 0.0
        %1061 = vmatprep.subr.mxu0 0.0
        %1062 = vmatpush1.msra.mxu0 0.0
        %1063 = vmatprep.subr.mxu0 0.0
        %1064 = vmatpush1.msra.mxu0 0.0
        %1065 = vmatprep.subr.mxu0 0.0
        %1066 = vmatpush1.msra.mxu0 0.0
        %1067 = vmatprep.subr.mxu0 0.0
        %1068 = vmatpush1.msra.mxu0 0.0
        %1069 = vmatprep.subr.mxu0 0.0
        %1070 = vmatpush1.msra.mxu0 0.0
        %1071 = vmatprep.subr.mxu0 0.0
        %1072 = vmatpush1.msra.mxu0 0.0
        %1073 = vmatprep.subr.mxu0 0.0
        %1074 = vmatpush1.msra.mxu0 0.0
        %1075 = vmatprep.subr.mxu0 0.0
        %1076 = vmatpush1.msra.mxu0 0.0
        %1077 = vmatprep.subr.mxu0 0.0
        %1078 = vmatpush1.msra.mxu0 0.0
        %1079 = vmatprep.subr.mxu0 0.0
        %1080 = vmatpush1.msra.mxu0 0.0
        %1081 = vmatprep.subr.mxu0 0.0
        %1082 = vmatpush1.msra.mxu0 0.0
        %1083 = vmatprep.subr.mxu0 0.0
        %1084 = vmatpush1.msra.mxu0 0.0
        %1085 = vmatprep.subr.mxu0 0.0
        %1086 = vmatpush1.msra.mxu0 0.0
        %1087 = vmatprep.subr.mxu0 0.0
        %1088 = vmatpush1.msra.mxu0 0.0
        %1089 = vmatprep.subr.mxu0 0.0
        %1090 = vmatpush1.msra.mxu0 0.0
        %1091 = vmatprep.subr.mxu0 0.0
        %1092 = vmatpush1.msra.mxu0 0.0
        %1093 = vmatprep.subr.mxu0 0.0
        %1094 = vmatpush1.msra.mxu0 0.0
        %1095 = vmatprep.subr.mxu0 0.0
        %1096 = vmatpush1.msra.mxu0 0.0
        %1097 = vmatprep.subr.mxu0 0.0
        %1098 = vmatpush1.msra.mxu0 0.0
        %1099 = vmatprep.subr.mxu0 0.0
        %1100 = vmatpush1.msra.mxu0 0.0
        %1101 = vmatprep.subr.mxu0 0.0
        %1102 = vmatpush1.msra.mxu0 0.0
        %1103 = vmatprep.subr.mxu0 0.0
        %1104 = vmatpush1.msra.mxu0 0.0
        %1105 = vmatprep.subr.mxu0 0.0
        %1106 = vmatpush1.msra.mxu0 0.0
        %1107 = vmatprep.subr.mxu0 0.0
        %1108 = vmatpush1.msra.mxu0 0.0
        %1109 = vmatprep.mubr.f32.mxu0 0.0
        %1110 = vmatmul.mubr.f32.gmra.mrb[0].mxu0 %v1043
        %v1111 = vpop.f32.mrb[0].mxu0
        %v1112 = vadd.f32 0.0, %v1111
        %v1113 = vpop.f32.mrb[0].mxu0
        %1114 = vdwg.mxu0
        %v1116 = vsel %vm789, %v1039, 0
        %v1119 = vsel %vm789, %v294, 0
        %1121 = vmatprep.subr.mxu0 0.0
        %1122 = vmatpush1.xpose.msra.mxu0 %v1119
        %1123 = vmatprep.subr.mxu0 0.0
        %1124 = vmatpush1.xpose.msra.mxu0 0.0
        %1125 = vmatprep.subr.mxu0 0.0
        %1126 = vmatpush1.xpose.msra.mxu0 0.0
        %1127 = vmatprep.subr.mxu0 0.0
        %1128 = vmatpush1.xpose.msra.mxu0 0.0
        %1129 = vmatprep.subr.mxu0 0.0
        %1130 = vmatpush1.xpose.msra.mxu0 0.0
        %1131 = vmatprep.subr.mxu0 0.0
        %1132 = vmatpush1.xpose.msra.mxu0 0.0
        %1133 = vmatprep.subr.mxu0 0.0
        %1134 = vmatpush1.xpose.msra.mxu0 0.0
        %1135 = vmatprep.subr.mxu0 0.0
        %1136 = vmatpush1.xpose.msra.mxu0 0.0
        %1137 = vmatprep.subr.mxu0 0.0
        %1138 = vmatpush1.xpose.msra.mxu0 0.0
        %1139 = vmatprep.subr.mxu0 0.0
        %1140 = vmatpush1.xpose.msra.mxu0 0.0
        %1141 = vmatprep.subr.mxu0 0.0
        %1142 = vmatpush1.xpose.msra.mxu0 0.0
        %1143 = vmatprep.subr.mxu0 0.0
        %1144 = vmatpush1.xpose.msra.mxu0 0.0
        %1145 = vmatprep.subr.mxu0 0.0
        %1146 = vmatpush1.xpose.msra.mxu0 0.0
        %1147 = vmatprep.subr.mxu0 0.0
        %1148 = vmatpush1.xpose.msra.mxu0 0.0
        %1149 = vmatprep.subr.mxu0 0.0
        %1150 = vmatpush1.xpose.msra.mxu0 0.0
        %1151 = vmatprep.subr.mxu0 0.0
        %1152 = vmatpush1.xpose.msra.mxu0 0.0
        %1153 = vmatprep.subr.mxu0 0.0
        %1154 = vmatpush1.xpose.msra.mxu0 0.0
        %1155 = vmatprep.subr.mxu0 0.0
        %1156 = vmatpush1.xpose.msra.mxu0 0.0
        %1157 = vmatprep.subr.mxu0 0.0
        %1158 = vmatpush1.xpose.msra.mxu0 0.0
        %1159 = vmatprep.subr.mxu0 0.0
        %1160 = vmatpush1.xpose.msra.mxu0 0.0
        %1161 = vmatprep.subr.mxu0 0.0
        %1162 = vmatpush1.xpose.msra.mxu0 0.0
        %1163 = vmatprep.subr.mxu0 0.0
        %1164 = vmatpush1.xpose.msra.mxu0 0.0
        %1165 = vmatprep.subr.mxu0 0.0
        %1166 = vmatpush1.xpose.msra.mxu0 0.0
        %1167 = vmatprep.subr.mxu0 0.0
        %1168 = vmatpush1.xpose.msra.mxu0 0.0
        %1169 = vmatprep.subr.mxu0 0.0
        %1170 = vmatpush1.xpose.msra.mxu0 0.0
        %1171 = vmatprep.subr.mxu0 0.0
        %1172 = vmatpush1.xpose.msra.mxu0 0.0
        %1173 = vmatprep.subr.mxu0 0.0
        %1174 = vmatpush1.xpose.msra.mxu0 0.0
        %1175 = vmatprep.subr.mxu0 0.0
        %1176 = vmatpush1.xpose.msra.mxu0 0.0
        %1177 = vmatprep.subr.mxu0 0.0
        %1178 = vmatpush1.xpose.msra.mxu0 0.0
        %1179 = vmatprep.subr.mxu0 0.0
        %1180 = vmatpush1.xpose.msra.mxu0 0.0
        %1181 = vmatprep.subr.mxu0 0.0
        %1182 = vmatpush1.xpose.msra.mxu0 0.0
        %1183 = vmatprep.subr.mxu0 0.0
        %1184 = vmatpush1.xpose.msra.mxu0 0.0
        %1185 = vmatprep.mubr.f32.mxu0 0.0
        %1186 = vmatmul.mubr.f32.gmra.mrb[0].mxu0 %v1116
        %v1187 = vpop.f32.mrb[0].mxu0
        %v1188 = vadd.f32 0.0, %v1187
        %v1189 = vpop.f32.mrb[0].mxu0
        %1190 = vdwg.mxu0
        %v1192 = vsel %vm789, %v1112, 0
        %v1195 = vsel %vm789, %v295, 0
        %1197 = vmatprep.subr.mxu0 0.0
        %1198 = vmatpush1.xpose.msra.mxu0 %v1195
        %1199 = vmatprep.subr.mxu0 0.0
        %1200 = vmatpush1.xpose.msra.mxu0 0.0
        %1201 = vmatprep.subr.mxu0 0.0
        %1202 = vmatpush1.xpose.msra.mxu0 0.0
        %1203 = vmatprep.subr.mxu0 0.0
        %1204 = vmatpush1.xpose.msra.mxu0 0.0
        %1205 = vmatprep.subr.mxu0 0.0
        %1206 = vmatpush1.xpose.msra.mxu0 0.0
        %1207 = vmatprep.subr.mxu0 0.0
        %1208 = vmatpush1.xpose.msra.mxu0 0.0
        %1209 = vmatprep.subr.mxu0 0.0
        %1210 = vmatpush1.xpose.msra.mxu0 0.0
        %1211 = vmatprep.subr.mxu0 0.0
        %1212 = vmatpush1.xpose.msra.mxu0 0.0
        %1213 = vmatprep.subr.mxu0 0.0
        %1214 = vmatpush1.xpose.msra.mxu0 0.0
        %1215 = vmatprep.subr.mxu0 0.0
        %1216 = vmatpush1.xpose.msra.mxu0 0.0
        %1217 = vmatprep.subr.mxu0 0.0
        %1218 = vmatpush1.xpose.msra.mxu0 0.0
        %1219 = vmatprep.subr.mxu0 0.0
        %1220 = vmatpush1.xpose.msra.mxu0 0.0
        %1221 = vmatprep.subr.mxu0 0.0
        %1222 = vmatpush1.xpose.msra.mxu0 0.0
        %1223 = vmatprep.subr.mxu0 0.0
        %1224 = vmatpush1.xpose.msra.mxu0 0.0
        %1225 = vmatprep.subr.mxu0 0.0
        %1226 = vmatpush1.xpose.msra.mxu0 0.0
        %1227 = vmatprep.subr.mxu0 0.0
        %1228 = vmatpush1.xpose.msra.mxu0 0.0
        %1229 = vmatprep.subr.mxu0 0.0
        %1230 = vmatpush1.xpose.msra.mxu0 0.0
        %1231 = vmatprep.subr.mxu0 0.0
        %1232 = vmatpush1.xpose.msra.mxu0 0.0
        %1233 = vmatprep.subr.mxu0 0.0
        %1234 = vmatpush1.xpose.msra.mxu0 0.0
        %1235 = vmatprep.subr.mxu0 0.0
        %1236 = vmatpush1.xpose.msra.mxu0 0.0
        %1237 = vmatprep.subr.mxu0 0.0
        %1238 = vmatpush1.xpose.msra.mxu0 0.0
        %1239 = vmatprep.subr.mxu0 0.0
        %1240 = vmatpush1.xpose.msra.mxu0 0.0
        %1241 = vmatprep.subr.mxu0 0.0
        %1242 = vmatpush1.xpose.msra.mxu0 0.0
        %1243 = vmatprep.subr.mxu0 0.0
        %1244 = vmatpush1.xpose.msra.mxu0 0.0
        %1245 = vmatprep.subr.mxu0 0.0
        %1246 = vmatpush1.xpose.msra.mxu0 0.0
        %1247 = vmatprep.subr.mxu0 0.0
        %1248 = vmatpush1.xpose.msra.mxu0 0.0
        %1249 = vmatprep.subr.mxu0 0.0
        %1250 = vmatpush1.xpose.msra.mxu0 0.0
        %1251 = vmatprep.subr.mxu0 0.0
        %1252 = vmatpush1.xpose.msra.mxu0 0.0
        %1253 = vmatprep.subr.mxu0 0.0
        %1254 = vmatpush1.xpose.msra.mxu0 0.0
        %1255 = vmatprep.subr.mxu0 0.0
        %1256 = vmatpush1.xpose.msra.mxu0 0.0
        %1257 = vmatprep.subr.mxu0 0.0
        %1258 = vmatpush1.xpose.msra.mxu0 0.0
        %1259 = vmatprep.subr.mxu0 0.0
        %1260 = vmatpush1.xpose.msra.mxu0 0.0
        %1261 = vmatprep.mubr.f32.mxu0 0.0
        %1262 = vmatmul.mubr.f32.gmra.mrb[0].mxu0 %v1192
        %v1263 = vpop.f32.mrb[0].mxu0
        %v1264 = vadd.f32 0.0, %v1263
        %v1265 = vpop.f32.mrb[0].mxu0
        %1266 = vdwg.mxu0
        %v1267 = vsel %vm340, %v1188, 0.0
        %v1268 = vsel %vm340, %v1264, 0.0
        %v1269 = vadd.f32 %v1267, %v1268
        %v1270 = vld [vmem:[%s4] sm:$0x1]
        %v1272 = vlaneseq
        %v1273 = vshrl.u32 %v1272, 7
        %v1274 = vsub.s32 0, %v1273
        %v1275 = vrot.slane %v1270, %v1274
        %v1277 = vadd.f32 %v1269, %v1275
        %1278 = vst.msk [vmem:[%s284] sm:$0xff] %vm340, %v1277
        %p1279 = scmp.lt.s32.totalorder %s16, 1
        %s1280 = scalar_select %p1279, %s16, 1
        %s1281 = smul.addr %s1280, 8
        %s1282 = scalar_lea.vmem %s5, %s1281
        // Predicated region
        $region79: #{tpu_custom_call.1} parent=73 // pred_check
          %p1283 = pneg %p149
        $region80: #{tpu_custom_call.1} parent=73 // pred_check_branch
          %1285 = sbr.rel (%p1283) target = $region82
        $region81: #{tpu_custom_call.1} parent=73 // pred_region
          _
        $region82: #{tpu_custom_call.1} parent=73 // pred_fallthru
          _
      $region74: #{tpu_custom_call.1} parent=5 // pred_fallthru
        _
      %p1286 = scmp.le.s32.totalorder 2, %s11
      // Predicated region
      $region83: #{tpu_custom_call.1} parent=5 // pred_check
        %p1287 = pneg %p1286
      $region84: #{tpu_custom_call.1} parent=5 // pred_check_branch
        %1289 = sbr.rel (%p1287) target = $region86
      $region85: #{tpu_custom_call.1} parent=5 // pred_region
        %s1290 = ssub.s32 %s11, 2
        // Predicated region
        $region87: #{tpu_custom_call.1} parent=85 // pred_check
          %p1291 = pneg %p155
        $region88: #{tpu_custom_call.1} parent=85 // pred_check_branch
          %1293 = sbr.rel (%p1291) target = $region90
        $region89: #{tpu_custom_call.1} parent=85 // pred_region
          %p1294 = scmp.lt.s32.totalorder %s17, 1
          %s1295 = scalar_select %p1294, %s17, 1
          %s1296 = smul.addr %s1295, 8
          %s1297 = scalar_lea.vmem %s5, %s1296
        $region90: #{tpu_custom_call.1} parent=85 // pred_fallthru
          _
      $region86: #{tpu_custom_call.1} parent=5 // pred_fallthru
        _
    $region6: #{tpu_custom_call.1} parent=1 // loop_footer
      %s15 = sadd.s32 1, %s11
    $region7: #{tpu_custom_call.1} parent=1 // loop_footer_branch
      %10 = sbr.rel target = $region3
    $region8: #{tpu_custom_call.1} parent=1 // loop_exit
      _

</llo_original>
